<compile_context>
chip_gen: v7x
topology: tpu7x:2x2x1
jax: 0.10.0
libtpu: 0.0.40
codegen_flags: <defaults>
</compile_context>

<pallas_src>
import functools

import jax
import jax.numpy as jnp
from jax import lax
from jax.experimental import pallas as pl
from jax.experimental.pallas import tpu as pltpu

# --- module "parameters" (from __init__ defaults) ----------------------------
GAMMA_NEG = 4.0
GAMMA_POS = 1.0
CLIP = 0.05
EPS = 1e-05

_LANES = 128       # TPU lane width
_SUBLANES = 8      # f32 sublane tile (output partials are f32)


def _round_up(a, m):
    return -(-a // m) * m


def _sublane_req(dtype):
    """Minimum second-to-last tile dim for a dtype (f32:8, bf16:16, int8/bool:32)."""
    return {4: 8, 2: 16, 1: 32}.get(jnp.dtype(dtype).itemsize, 8)


def _int_pow(v, e):
    """v**e for a small static non-negative integer e via repeated squaring.

    Pure VPU multiplies -> keeps the single-slot EUP free (vs jnp.power, which
    lowers to exp(e*log(v)))."""
    e = int(e)
    if e == 0:
        return jnp.ones_like(v)
    acc = None
    sq = v
    while e:
        if e & 1:
            acc = sq if acc is None else acc * sq
        e >>= 1
        if e:
            sq = sq * sq
    return acc


def _asl_tile_kernel(x_ref, y_ref, part_ref, *, gamma_neg, gamma_pos, clip, eps,
                     n_rows, tile_rows, binary_fastpath, needs_row_mask):
    x = x_ref[...].astype(jnp.float32)

    # sigmoid probabilities (EUP)
    xs_pos = jax.nn.sigmoid(x)
    xs_neg = 1.0 - xs_pos

    # asymmetric clipping:  xs_neg = clamp(xs_neg + clip, max=1)
    if clip is not None and clip > 0:
        xs_neg = jnp.minimum(xs_neg + clip, 1.0)

    if binary_fastpath:
        # y in {0,1} and gammas are small integers:
        #   - fuse the two logs into one select + one log
        #   - replace jnp.power (exp+log on EUP) with integer squaring (VPU)
        is_pos = y_ref[...].astype(jnp.float32) > 0.5
        p = jnp.where(is_pos, xs_pos, xs_neg)
        loss = jnp.log(jnp.maximum(p, eps))
        if gamma_neg > 0 or gamma_pos > 0:
            base = 1.0 - p
            loss = loss * jnp.where(is_pos,
                                    _int_pow(base, gamma_pos),
                                    _int_pow(base, gamma_neg))
    else:
        # General path: soft labels / non-integer gammas (matches PyTorch op-for-op).
        y = y_ref[...].astype(jnp.float32)
        anti = 1.0 - y
        loss = y * jnp.log(jnp.maximum(xs_pos, eps))
        loss = loss + anti * jnp.log(jnp.maximum(xs_neg, eps))
        if gamma_neg > 0 or gamma_pos > 0:
            base = 1.0 - xs_pos * y - xs_neg * anti
            expo = gamma_pos * y + gamma_neg * anti
            loss = loss * jnp.power(base, expo)

    def _emit(v):
        # Per-block, per-lane partial sums (sublane reduce), replicated across
        # 8 sublanes so the output block is a full lane-dense tile.  The
        # wrapper divides by 8 (exact).
        lane_sums = jnp.sum(v, axis=0, keepdims=True)            # (1, c)
        part_ref[...] = jnp.broadcast_to(lane_sums, part_ref.shape)

    if not needs_row_mask:
        _emit(loss)
    else:
        # Only the last row block can contain padded garbage rows -> mask work
        # (iota + compare + select) runs there only.  Mask is relative to the
        # tile remainder, so no global flat index / int32 overflow.
        i = pl.program_id(0)
        is_last = i == pl.num_programs(0) - 1

        @pl.when(jnp.logical_not(is_last))
        def _():
            _emit(loss)

        @pl.when(is_last)
        def _():
            rows = lax.broadcasted_iota(jnp.int32, loss.shape, 0)
            _emit(jnp.where(rows < (n_rows - i * tile_rows), loss, 0.0))


def asymmetric_loss(x, y, *, gamma_neg=GAMMA_NEG, gamma_pos=GAMMA_POS,
                    clip=CLIP, eps=EPS, binary_targets=None,
                    tile_budget_bytes=8 * 1024 * 1024):
    """Pallas implementation of AsymmetricLoss.forward. Returns a scalar.

    x: (n, c) logits (f32 / bf16 / f16 accepted as-is, no conversion pass).
    y: (n, c) multi-label targets (bool / int8 / float accepted as-is).
    binary_targets: True -> EUP-saving fast path (y assumed in {0,1});
                    False -> general soft-label path;
                    None (default) -> fast path only when y is bool/integer.
    """
    assert x.shape == y.shape and x.ndim == 2
    n, c = x.shape

    # --- dtype-aware, VMEM-budgeted row tiling (no input copies) -------------
    sub = max(_sublane_req(x.dtype), _sublane_req(y.dtype))
    c_lanes = _round_up(c, _LANES)                       # VMEM lane footprint / row
    in_bytes = jnp.dtype(x.dtype).itemsize + jnp.dtype(y.dtype).itemsize
    # ~tile_budget_bytes of (x + y) per buffer; double-buffered by BlockSpec
    # => <= ~2x budget total, comfortably under the 32 MiB scoped VMEM limit.
    budget_rows = max(sub,
                      (int(tile_budget_bytes) // (c_lanes * in_bytes)) // sub * sub)
    # TODO(synk): add column tiling for extremely wide c (classification heads
    # never approach that); a single sub-row tile could exceed VMEM otherwise.

    tn = budget_rows if n > budget_rows else n           # tn == n (full dim) is legal
    grid = -(-n // tn)
    # v7x megacore: ensure >=2 parallel row blocks when there's enough work to
    # be worth splitting across two TensorCores (v5e/v6e: harmless).
    if grid == 1 and n >= 2 * sub and n * c_lanes >= (1 << 19):
        tn = _round_up(-(-n // 2), sub)
        grid = -(-n // tn)
    needs_row_mask = (n % tn) != 0

    # --- fast-path selection --------------------------------------------------
    if binary_targets is None:
        binary_targets = (jnp.issubdtype(y.dtype, jnp.bool_)
                          or jnp.issubdtype(y.dtype, jnp.integer))
    use_fast = (bool(binary_targets)
                and float(gamma_pos).is_integer()
                and float(gamma_neg).is_integer()
                and 0 <= gamma_pos <= 8 and 0 <= gamma_neg <= 8)

    kernel = functools.partial(
        _asl_tile_kernel,
        gamma_neg=float(gamma_neg), gamma_pos=float(gamma_pos),
        clip=None if clip is None else float(clip), eps=float(eps),
        n_rows=n, tile_rows=tn, binary_fastpath=use_fast,
        needs_row_mask=needs_row_mask)

    partials = pl.pallas_call(
        kernel,
        out_shape=jax.ShapeDtypeStruct((grid * _SUBLANES, c), jnp.float32),
        grid=(grid,),
        in_specs=[pl.BlockSpec((tn, c), lambda i: (i, 0)),
                  pl.BlockSpec((tn, c), lambda i: (i, 0))],
        out_specs=pl.BlockSpec((_SUBLANES, c), lambda i: (i, 0)),
        compiler_params=pltpu.CompilerParams(
            dimension_semantics=("parallel",),        # megacore sharding on v7x
            vmem_limit_bytes=32 * 1024 * 1024),
    )(x, y)

    # Each block's per-lane sums are replicated across 8 sublanes -> /8 (exact),
    # then   _loss = -loss.sum() / x.size(0) / y.size(1).
    total = jnp.sum(partials) / 8.0
    return -total / jnp.float32(n) / jnp.float32(c)


def _asl_ref(x, y, gamma_neg=GAMMA_NEG, gamma_pos=GAMMA_POS, clip=CLIP, eps=EPS):
    """Pure-JAX reference mirroring the PyTorch forward."""
    x = x.astype(jnp.float32)
    y = y.astype(jnp.float32)
    xs_pos = jax.nn.sigmoid(x)
    xs_neg = 1.0 - xs_pos
    if clip is not None and clip > 0:
        xs_neg = jnp.minimum(xs_neg + clip, 1.0)
    anti = 1.0 - y
    loss = y * jnp.log(jnp.maximum(xs_pos, eps))
    loss = loss + anti * jnp.log(jnp.maximum(xs_neg, eps))
    if gamma_neg > 0 or gamma_pos > 0:
        w = jnp.power(1.0 - xs_pos * y - xs_neg * anti,
                      gamma_pos * y + gamma_neg * anti)
        loss = loss * w
    return -jnp.sum(loss) / x.shape[0] / y.shape[1]


if __name__ == "__main__":
    key = jax.random.PRNGKey(0)
    kx, ky = jax.random.split(key)

    # 1) Small (batch, num_classes) multi-label case — general path (float y).
    N, C = 8, 32
    x = jax.random.normal(kx, (N, C), dtype=jnp.float32)
    y = (jax.random.uniform(ky, (N, C)) > 0.5).astype(jnp.float32)
    ref = _asl_ref(x, y)
    out = jax.block_until_ready(asymmetric_loss(x, y))
    assert jnp.allclose(out, ref, rtol=1e-5, atol=1e-5), (out, ref)

    # 1b) Same inputs, explicit binary fast path.
    out_fast = jax.block_until_ready(asymmetric_loss(x, y, binary_targets=True))
    assert jnp.allclose(out_fast, ref, rtol=1e-5, atol=1e-5), (out_fast, ref)

    # 2) Odd shape with a tiny tile budget -> multi-block grid + row-tail mask.
    N2, C2 = 50, 77
    x2 = jax.random.normal(kx, (N2, C2), dtype=jnp.float32)
    y2 = (jax.random.uniform(ky, (N2, C2)) > 0.5).astype(jnp.float32)
    out2 = jax.block_until_ready(asymmetric_loss(x2, y2, tile_budget_bytes=8192))
    ref2 = _asl_ref(x2, y2)
    assert jnp.allclose(out2, ref2, rtol=1e-5, atol=1e-5), (out2, ref2)

    # 3) Bandwidth-lean input dtypes: bf16 logits + int8 binarized targets
    #    (auto-selects the fast path; dtype-aware sublane tiling).
    N3, C3 = 64, 160
    x3 = jax.random.normal(kx, (N3, C3), dtype=jnp.bfloat16)
    y3 = (jax.random.uniform(ky, (N3, C3)) > 0.5).astype(jnp.int8)
    out3 = jax.block_until_ready(asymmetric_loss(x3, y3))
    ref3 = _asl_ref(x3, y3)
    assert jnp.allclose(out3, ref3, rtol=1e-5, atol=1e-5), (out3, ref3)

    print("KERNEL_OK")
</pallas_src>

<mosaic_0001>
module attributes {stable_mosaic.version = 11 : i64} {
  func.func @_asl_tile_kernel(%arg0: i32, %arg1: memref<8x32xf32, #tpu.memory_space<vmem>>, %arg2: memref<8x32xf32, #tpu.memory_space<vmem>>, %arg3: memref<8x32xf32, #tpu.memory_space<vmem>>) attributes {dimension_semantics = [#tpu.dimension_semantics<parallel>], iteration_bounds = array<i64: 1>, scalar_prefetch = 0 : i64, scratch_operands = 0 : i64, tpu.core_type = #tpu.core_type<tc>, window_params = [{transform_indices = @transform_0, window_bounds = array<i64: 8, 32>}, {transform_indices = @transform_1, window_bounds = array<i64: 8, 32>}, {transform_indices = @transform_2, window_bounds = array<i64: 8, 32>}]} {
    %c0 = arith.constant 0 : index
    %c0_0 = arith.constant 0 : index
    %0 = vector.load %arg1[%c0, %c0_0] : memref<8x32xf32, #tpu.memory_space<vmem>>, vector<8x32xf32>
    %1 = arith.negf %0 : vector<8x32xf32>
    %2 = math.exp %1 : vector<8x32xf32>
    %cst = arith.constant 1.000000e+00 : f32
    %3 = vector.broadcast %cst : f32 to vector<8x32xf32>
    %4 = arith.addf %3, %2 : vector<8x32xf32>
    %5 = arith.divf %3, %4 : vector<8x32xf32>
    %cst_1 = arith.constant 1.000000e+00 : f32
    %6 = vector.broadcast %cst_1 : f32 to vector<8x32xf32>
    %7 = arith.subf %6, %5 : vector<8x32xf32>
    %cst_2 = arith.constant 5.000000e-02 : f32
    %8 = vector.broadcast %cst_2 : f32 to vector<8x32xf32>
    %9 = arith.addf %7, %8 : vector<8x32xf32>
    %cst_3 = arith.constant 1.000000e+00 : f32
    %10 = vector.broadcast %cst_3 : f32 to vector<8x32xf32>
    %11 = arith.minimumf %9, %10 : vector<8x32xf32>
    %c0_4 = arith.constant 0 : index
    %c0_5 = arith.constant 0 : index
    %12 = vector.load %arg2[%c0_4, %c0_5] : memref<8x32xf32, #tpu.memory_space<vmem>>, vector<8x32xf32>
    %cst_6 = arith.constant 1.000000e+00 : f32
    %13 = vector.broadcast %cst_6 : f32 to vector<8x32xf32>
    %14 = arith.subf %13, %12 : vector<8x32xf32>
    %cst_7 = arith.constant 9.99999974E-6 : f32
    %15 = vector.broadcast %cst_7 : f32 to vector<8x32xf32>
    %16 = arith.maximumf %5, %15 : vector<8x32xf32>
    %17 = math.log %16 : vector<8x32xf32>
    %18 = arith.mulf %12, %17 : vector<8x32xf32>
    %cst_8 = arith.constant 9.99999974E-6 : f32
    %19 = vector.broadcast %cst_8 : f32 to vector<8x32xf32>
    %20 = arith.maximumf %11, %19 : vector<8x32xf32>
    %21 = math.log %20 : vector<8x32xf32>
    %22 = arith.mulf %14, %21 : vector<8x32xf32>
    %23 = arith.addf %18, %22 : vector<8x32xf32>
    %24 = arith.mulf %5, %12 : vector<8x32xf32>
    %cst_9 = arith.constant 1.000000e+00 : f32
    %25 = vector.broadcast %cst_9 : f32 to vector<8x32xf32>
    %26 = arith.subf %25, %24 : vector<8x32xf32>
    %27 = arith.mulf %11, %14 : vector<8x32xf32>
    %28 = arith.subf %26, %27 : vector<8x32xf32>
    %cst_10 = arith.constant 1.000000e+00 : f32
    %29 = vector.broadcast %cst_10 : f32 to vector<8x32xf32>
    %30 = arith.mulf %29, %12 : vector<8x32xf32>
    %cst_11 = arith.constant 4.000000e+00 : f32
    %31 = vector.broadcast %cst_11 : f32 to vector<8x32xf32>
    %32 = arith.mulf %31, %14 : vector<8x32xf32>
    %33 = arith.addf %30, %32 : vector<8x32xf32>
    %34 = math.powf %28, %33 : vector<8x32xf32>
    %35 = arith.mulf %23, %34 : vector<8x32xf32>
    %cst_12 = arith.constant dense<0.000000e+00> : vector<32xf32>
    %36 = vector.multi_reduction <add>, %35, %cst_12 [0] : vector<8x32xf32> to vector<32xf32>
    %37 = vector.shape_cast %36 : vector<32xf32> to vector<1x32xf32>
    %38 = vector.shape_cast %37 : vector<1x32xf32> to vector<1x32xf32>
    %39 = vector.broadcast %38 : vector<1x32xf32> to vector<8x32xf32>
    %c0_13 = arith.constant 0 : index
    %c0_14 = arith.constant 0 : index
    %40 = vector.load %arg3[%c0_13, %c0_14] : memref<8x32xf32, #tpu.memory_space<vmem>>, vector<8x32xf32>
    tpu.vector_store %arg3[%c0_13, %c0_14], %39 {strides = array<i32>} : memref<8x32xf32, #tpu.memory_space<vmem>>, vector<8x32xf32>,
    return
  }
  func.func @transform_0(%arg0: i32) -> (i32, i32) {
    %c0_i32 = arith.constant 0 : i32
    %c0_i32_0 = arith.constant 0 : i32
    return %arg0, %c0_i32 : i32, i32
  }
  func.func @transform_1(%arg0: i32) -> (i32, i32) {
    %c0_i32 = arith.constant 0 : i32
    %c0_i32_0 = arith.constant 0 : i32
    return %arg0, %c0_i32 : i32, i32
  }
  func.func @transform_2(%arg0: i32) -> (i32, i32) {
    %c0_i32 = arith.constant 0 : i32
    %c0_i32_0 = arith.constant 0 : i32
    return %arg0, %c0_i32 : i32, i32
  }
}

</mosaic_0001>

<llo_original>
// kernel: tpu_custom_call.1
$region0: #{tpu_custom_call.1}
  #allocation0 [shape = 'u32[]', space=smem, size = 0x4, offset = 0x4, fixed_abs, tag = 'smem constant byte address 0x4 - core index']
  #allocation1 [shape = 'u32[144,128]{1,0:T(1,128)}', space=vmem, size = 0x12000, scoped, tag = 'internal scratch']
  %s0 = inlined_call_operand.hbm [shape: f32[8,32], index: 0, kind: input, shape index: {}]
  %s1 = inlined_call_operand.hbm [shape: f32[8,32], index: 1, kind: input, shape index: {}]
  %s2 = inlined_call_operand.hbm [shape: f32[8,32], index: 2, kind: output, shape index: {}]
  %s3 = sld [smem:[#allocation0]]
  $region26: #{tpu_custom_call.1} parent=0
    _
  %s5 = ssub.s32 1, %s3
  %s6 = scalar_select 0, %s5, %s3
  $region1: #{tpu_custom_call.1} parent=0
    #allocation2 [shape = 'u8[4096]{0}', space=vmem, size = 0x1000, scoped, tag = 'input window, operand 0, single buffered']
    #allocation3 [shape = 's32[1]{0}', space=sflag, size = 0x4, scoped, tag = 'scoped memory for tpu_custom_call.1']
    #allocation4 [shape = 's32[1]{0}', space=sflag, size = 0x4, scoped, tag = 'scoped memory for tpu_custom_call.1']
    #allocation5 [shape = 'u8[4096]{0}', space=vmem, size = 0x1000, scoped, tag = 'input window, operand 1, single buffered']
    #allocation6 [shape = 's32[1]{0}', space=sflag, size = 0x4, scoped, tag = 'scoped memory for tpu_custom_call.1']
    #allocation7 [shape = 'u8[4096]{0}', space=vmem, size = 0x1000, scoped, tag = 'output window, operand 0, single buffered']
    %7 = vsyncpa [#allocation3], 0
    %8 = vsyncpa [#allocation6], 0
    %9 = vsyncpa [#allocation4], 0
    // Predicated region
    $region2: #{tpu_custom_call.1} parent=1 // pred_check
      _
    $region3: #{tpu_custom_call.1} parent=1 // pred_check_branch
      %11 = sbr.rel (0) target = $region5
    $region4: #{tpu_custom_call.1} parent=1 // pred_region
      %s13 = ssub.s32 128, 128
      %14 = vsyncadd [#allocation3], %s13
      %s16 = sshll.u32 [#allocation2], 4
      %s17 = int_to_ptr.vmem [resolvable:$true] %s16
      %19 = dma.hbm_to_vmem [thread:$0]  %s0, 128, %s17, [#allocation3]
    $region5: #{tpu_custom_call.1} parent=1 // pred_fallthru
      _
    // Predicated region
    $region6: #{tpu_custom_call.1} parent=1 // pred_check
      _
    $region7: #{tpu_custom_call.1} parent=1 // pred_check_branch
      %21 = sbr.rel (0) target = $region9
    $region8: #{tpu_custom_call.1} parent=1 // pred_region
      %s23 = ssub.s32 128, 128
      %24 = vsyncadd [#allocation6], %s23
      %s26 = sshll.u32 [#allocation5], 4
      %s27 = int_to_ptr.vmem [resolvable:$true] %s26
      %29 = dma.hbm_to_vmem [thread:$0]  %s1, 128, %s27, [#allocation6]
    $region9: #{tpu_custom_call.1} parent=1 // pred_fallthru
      _
    // Predicated region
    $region10: #{tpu_custom_call.1} parent=1 // pred_check
      _
    $region11: #{tpu_custom_call.1} parent=1 // pred_check_branch
      %31 = sbr.rel (0) target = $region13
    $region12: #{tpu_custom_call.1} parent=1 // pred_region
      %32 = dma.done [#allocation3], 128
    $region13: #{tpu_custom_call.1} parent=1 // pred_fallthru
      _
    // Predicated region
    $region14: #{tpu_custom_call.1} parent=1 // pred_check
      _
    $region15: #{tpu_custom_call.1} parent=1 // pred_check_branch
      %34 = sbr.rel (0) target = $region17
    $region16: #{tpu_custom_call.1} parent=1 // pred_region
      %35 = dma.done [#allocation6], 128
    $region17: #{tpu_custom_call.1} parent=1 // pred_fallthru
      _
    %v36 = vld [vmem:[#allocation2] sm:$0xff]
    %v37 = vxor.u32 %v36, 2147483648
    %v38 = vmul.f32 %v37, 1.442695
    %v39 = vpow.pop %v38
    %v40 = vadd.f32 %v39, 1.0
    %v41 = vrcp.pop %v40
    %v42 = vmul.f32 1.0, %v41
    %v43 = vsub.f32 1.0, %v42
    %v44 = vadd.f32 %v43, 0.05
    %v45 = vmin.f32 %v44, 1.0
    %v46 = vld [vmem:[#allocation5] sm:$0xff]
    %v47 = vsub.f32 1.0, %v46
    %v48 = vmax.f32 %v42, 1e-05
    %v49 = vlog2.pop %v48
    %v50 = vmul.f32 %v49, 0.6931472
    %v51 = vmul.f32 %v46, %v50
    %v52 = vmax.f32 %v45, 1e-05
    %v53 = vlog2.pop %v52
    %v54 = vmul.f32 %v53, 0.6931472
    %v55 = vmul.f32 %v47, %v54
    %v56 = vadd.f32 %v51, %v55
    %v57 = vmul.f32 %v42, %v46
    %v58 = vsub.f32 1.0, %v57
    %v59 = vmul.f32 %v45, %v47
    %v60 = vsub.f32 %v58, %v59
    %v61 = vmul.f32 %v47, 4.0
    %v62 = vadd.f32 %v46, %v61
    %v63 = vpow.f32 %v60, %v62
    %v64 = vmul.f32 %v56, %v63
    %vm65 = vcmask 261120
    %v66 = vsel %vm65, %v64, 0.0
    %v67 = vrot.slane %v66, 4
    %v68 = vadd.f32 %v66, %v67
    %v69 = vrot.slane %v68, 2
    %v70 = vadd.f32 %v68, %v69
    %v71 = vrot.slane %v70, 1
    %v72 = vadd.f32 %v70, %v71
    %73 = vst.msk [vmem:[#allocation7] sm:$0xff] %vm65, %v72
    // Predicated region
    $region18: #{tpu_custom_call.1} parent=1 // pred_check
      _
    $region19: #{tpu_custom_call.1} parent=1 // pred_check_branch
      %75 = sbr.rel (0) target = $region21
    $region20: #{tpu_custom_call.1} parent=1 // pred_region
      %s77 = ssub.s32 128, 128
      %78 = vsyncadd [#allocation4], %s77
      %s80 = sshll.u32 [#allocation7], 4
      %s81 = int_to_ptr.vmem [resolvable:$true] %s80
      %83 = dma.vmem_to_hbm [thread:$0]  %s81, 128, %s2, [#allocation4]
    $region21: #{tpu_custom_call.1} parent=1 // pred_fallthru
      _
    // Predicated region
    $region22: #{tpu_custom_call.1} parent=1 // pred_check
      _
    $region23: #{tpu_custom_call.1} parent=1 // pred_check_branch
      %85 = sbr.rel (0) target = $region25
    $region24: #{tpu_custom_call.1} parent=1 // pred_region
      %86 = dma.done [#allocation4], 128
    $region25: #{tpu_custom_call.1} parent=1 // pred_fallthru
      _
    %87 = vsyncpa [#allocation3], 1
    %88 = vsyncpa [#allocation6], 1
    %89 = vsyncpa [#allocation4], 1

</llo_original>
